<compile_context>
chip_gen: v5e
topology: v5e:2x2
jax: 0.10.0
libtpu: 0.0.40
codegen_flags: <defaults>
</compile_context>

<pallas_src>
import jax
import jax.numpy as jnp
import numpy as np
from jax import lax
from jax.experimental import pallas as pl
from jax.experimental.pallas import tpu as pltpu


def _upscale2x_kernel(xm_ref, xh_ref, w_ref, b_ref, o_ref, xl_ref):
    # xm_ref: (1, tH, W+1, Cin)      rows [j*tH, (j+1)*tH) of the padded input
    # xh_ref: (1, 1,  W+1, Cin)      halo row (j+1)*tH (zero pad row on last tile)
    # w_ref : (2*Cin, 6*Cout)        fused weights [WE | WD | WU]
    # b_ref : (1, 2*Cout)            bias tiled over the 2 column parities (f32)
    # o_ref : (1, tH, 2, W, 2*Cout)  row-major identical to NHWC (2*tH, 2*W, Cout)
    # xl_ref: ((tH+1)*W, 2*Cin)      VMEM scratch stencil operand
    tH = xm_ref.shape[1]
    W = xm_ref.shape[2] - 1
    Cin = xm_ref.shape[3]
    C2 = o_ref.shape[4]                      # 2*Cout
    M = tH * W

    xm = xm_ref[0]                           # (tH, W+1, Cin)
    xh = xh_ref[0]                           # (1,  W+1, Cin)

    # Assemble the stencil operand with direct slice-stores (no concat chain):
    # row r*W+w holds [x(r, w) | x(r, w+1)]; rows 0..tH-1 come from the main
    # block, row tH from the halo row.
    xl_ref[0:M, 0:Cin] = xm[:, :W, :].reshape(M, Cin)
    xl_ref[0:M, Cin:2 * Cin] = xm[:, 1:, :].reshape(M, Cin)
    xl_ref[M:M + W, 0:Cin] = xh[:, :W, :].reshape(W, Cin)
    xl_ref[M:M + W, Cin:2 * Cin] = xh[:, 1:, :].reshape(W, Cin)

    xl = xl_ref[...]                         # ((tH+1)*W, 2*Cin)
    prec = lax.Precision.HIGHEST if xl.dtype == jnp.float32 else None
    # One wide MXU pass, f32 accumulation.
    # Columns: [even row 2h | odd row 2h+1 (from row h) | odd row 2h+1 (from row h+1)]
    r = jnp.dot(xl, w_ref[...], preferred_element_type=jnp.float32, precision=prec)

    bias = b_ref[...]                        # (1, 2*Cout), f32
    even = r[0:M, 0:C2] + bias
    odd = r[0:M, C2:2 * C2] + r[W:M + W, 2 * C2:3 * C2] + bias

    # Columns are (col-parity b, channel c); storing at [h, a, w, b*Cout + c]
    # makes the HBM array row-major identical to the NHWC output.
    o_ref[0, :, 0:1, :, :] = even.reshape(tH, 1, W, C2).astype(o_ref.dtype)
    o_ref[0, :, 1:2, :, :] = odd.reshape(tH, 1, W, C2).astype(o_ref.dtype)


def _build_fused_weights(weight):
    """(Cin, Cout, 3, 3) torch ConvTranspose2d weight -> (2*Cin, 6*Cout).

    Row blocks (K):   [tap x(h, w) | tap x(h, w+1)]
    Column blocks (N): WE -> output row 2h            (only needs input row h)
                       WD -> output row 2h+1, from input row h
                       WU -> output row 2h+1, from input row h+1
    Within each: [output col 2w | output col 2w+1].
    """
    Cin, Cout = weight.shape[0], weight.shape[1]
    w = weight.astype(jnp.float32)
    z = jnp.zeros((Cin, Cout), jnp.float32)
    wk = lambda kh, kw: w[:, :, kh, kw]
    we = jnp.block([[wk(1, 1), wk(1, 2)], [z, wk(1, 0)]])
    wd = jnp.block([[wk(2, 1), wk(2, 2)], [z, wk(2, 0)]])
    wu = jnp.block([[wk(0, 1), wk(0, 2)], [z, wk(0, 0)]])
    return jnp.concatenate([we, wd, wu], axis=1)       # (2*Cin, 6*Cout)


def _vmem_capacity_bytes():
    try:
        return int(pltpu.get_tpu_info().vmem_capacity_bytes)
    except Exception:
        return 128 * 1024 * 1024          # v5e/v6e physical; conservative fallback


def _block_bytes(tH, W, Cin, Cout, in_sz, out_sz):
    in_main = tH * (W + 1) * Cin * in_sz
    in_halo = (W + 1) * Cin * in_sz
    out_blk = tH * 2 * W * 2 * Cout * out_sz
    scratch = (tH + 1) * W * 2 * Cin * in_sz
    weights = 2 * Cin * 6 * Cout * in_sz + 2 * Cout * 4
    return in_main, in_halo, out_blk, scratch, weights


def _pick_tile_h(H, W, Cin, Cout, in_sz, out_sz, budget_bytes):
    """Largest divisor of H whose per-step blocks fit the budget, keeping >= 2
    row tiles so the DMA pipeline / megacore sharding have work."""
    best = 1
    for t in range(1, H + 1):
        if H % t:
            continue
        if H > 1 and t > max(1, H // 2):
            continue
        im, ih, ob, sc, _ = _block_bytes(t, W, Cin, Cout, in_sz, out_sz)
        if im + ih + ob + sc <= budget_bytes:
            best = t
    return best


def upscale_twice_nhwc(x_nhwc, weight, bias, *,
                       compute_dtype=jnp.bfloat16, out_dtype=None):
    """ConvTranspose2d(Cin, Cout, 3, stride=2, padding=1, output_padding=1), NHWC."""
    if out_dtype is None:
        out_dtype = compute_dtype
    N, H, W, Cin = x_nhwc.shape
    assert weight.shape[0] == Cin and weight.shape[2:] == (3, 3)
    Cout = weight.shape[1]

    in_sz = np.dtype(compute_dtype).itemsize
    out_sz = np.dtype(out_dtype).itemsize
    cap = _vmem_capacity_bytes()
    budget = min(16 << 20, cap // 8)          # generation-aware per-step budget
    tH = _pick_tile_h(H, W, Cin, Cout, in_sz, out_sz, budget)
    n_tiles = H // tH

    im, ih, ob, sc, wb = _block_bytes(tH, W, Cin, Cout, in_sz, out_sz)
    needed = 2 * (im + ih + ob + wb) + sc      # double-buffered blocks + scratch
    vmem_limit = int(min(0.75 * cap, max(32 << 20, 2 * needed + (8 << 20))))
    if needed + (8 << 20) > 0.75 * cap:
        # TODO(synk): W-tiling path (1-column halo) for very wide rows.
        raise NotImplementedError(
            "row block too large for VMEM on this TPU generation; W tiling "
            "is not implemented yet")

    # One zero row/col at the far edge covers the h+1 / w+1 taps of the last
    # output row/column; the pad fuses with the required dtype-cast pass over
    # the (4x smaller) input tensor.
    xp = jnp.pad(x_nhwc.astype(compute_dtype), ((0, 0), (0, 1), (0, 1), (0, 0)))

    wf = _build_fused_weights(weight).astype(compute_dtype)       # (2*Cin, 6*Cout)
    b2 = jnp.tile(bias.astype(jnp.float32), 2).reshape(1, 2 * Cout)

    out5 = pl.pallas_call(
        _upscale2x_kernel,
        out_shape=jax.ShapeDtypeStruct((N, H, 2, W, 2 * Cout), out_dtype),
        grid_spec=pltpu.PrefetchScalarGridSpec(
            num_scalar_prefetch=0,
            grid=(N, n_tiles),
            in_specs=[
                pl.BlockSpec((1, tH, W + 1, Cin), lambda n, j: (n, j, 0, 0)),
                pl.BlockSpec((1, 1, W + 1, Cin),
                             lambda n, j: (n, (j + 1) * tH, 0, 0)),   # 1-row halo
                pl.BlockSpec((2 * Cin, 6 * Cout), lambda n, j: (0, 0)),
                pl.BlockSpec((1, 2 * Cout), lambda n, j: (0, 0)),
            ],
            out_specs=pl.BlockSpec((1, tH, 2, W, 2 * Cout),
                                   lambda n, j: (n, j, 0, 0, 0)),
            scratch_shapes=[pltpu.VMEM(((tH + 1) * W, 2 * Cin), compute_dtype)],
        ),
        compiler_params=pltpu.CompilerParams(
            dimension_semantics=("parallel", "parallel"),
            vmem_limit_bytes=vmem_limit,
        ),
    )(xp, xp, wf, b2)

    # Free (row-major) reinterpretation: (N, H, 2, W, 2*Cout) == NHWC (N, 2H, 2W, Cout).
    return out5.reshape(N, 2 * H, 2 * W, Cout)


def upscale_twice(x_nchw, weight, bias, *, compute_dtype=jnp.bfloat16, out_dtype=None):
    """NCHW interface matching the PyTorch module.  (In an NHWC pipeline call
    upscale_twice_nhwc directly and both transposes disappear.)"""
    x_nhwc = jnp.transpose(x_nchw, (0, 2, 3, 1))
    out_nhwc = upscale_twice_nhwc(x_nhwc, weight, bias,
                                  compute_dtype=compute_dtype, out_dtype=out_dtype)
    return jnp.transpose(out_nhwc, (0, 3, 1, 2))


def _conv_transpose_reference(x_nchw, weight, bias):
    # ConvTranspose2d == conv with lhs_dilation=stride, flipped kernel,
    # padding (k-1-p, k-1-p+output_padding).
    w_flip = jnp.flip(weight, axis=(2, 3))                      # (Cin, Cout, 3, 3)
    w_oihw = jnp.transpose(w_flip, (1, 0, 2, 3))                # (Cout, Cin, 3, 3)
    y = lax.conv_general_dilated(
        x_nchw, w_oihw, window_strides=(1, 1),
        padding=[(1, 2), (1, 2)], lhs_dilation=(2, 2),
        dimension_numbers=("NCHW", "OIHW", "NCHW"))
    return y + bias[None, :, None, None]


if __name__ == "__main__":
    N, Cin, Cout, H, W = 2, 4, 8, 16, 16

    key = jax.random.PRNGKey(0)
    kx, kw, kb = jax.random.split(key, 3)
    x = jax.random.normal(kx, (N, Cin, H, W), dtype=jnp.float32)
    # Deterministic synthetic parameters (same shapes as nn.ConvTranspose2d(Cin, Cout, 3)).
    weight = jax.random.normal(kw, (Cin, Cout, 3, 3), dtype=jnp.float32) / np.sqrt(Cin * 9)
    bias = jax.random.normal(kb, (Cout,), dtype=jnp.float32) * 0.1

    # Default path: bf16 operands & output, f32 MXU accumulation in-kernel.
    out = jax.block_until_ready(jax.jit(upscale_twice)(x, weight, bias))
    assert out.shape == (N, Cout, 2 * H, 2 * W), out.shape

    ref_f32 = jax.block_until_ready(_conv_transpose_reference(x, weight, bias))

    # Structural check (tiling / halo / fused weights) with f32 compute + f32 out.
    out_f32 = jax.block_until_ready(
        jax.jit(lambda a, b, c: upscale_twice(a, b, c, compute_dtype=jnp.float32))(
            x, weight, bias))
    np.testing.assert_allclose(np.asarray(out_f32), np.asarray(ref_f32),
                               rtol=5e-3, atol=5e-3)

    # bf16 path vs a reference computed on bf16-rounded inputs, rounded to bf16.
    xb = x.astype(jnp.bfloat16).astype(jnp.float32)
    wb = weight.astype(jnp.bfloat16).astype(jnp.float32)
    ref_bf16 = _conv_transpose_reference(xb, wb, bias)
    ref_bf16 = jax.block_until_ready(ref_bf16.astype(jnp.bfloat16).astype(jnp.float32))
    np.testing.assert_allclose(np.asarray(out).astype(np.float32),
                               np.asarray(ref_bf16), rtol=2e-2, atol=2e-2)

    print("KERNEL_OK")
</pallas_src>

<mosaic_0001>
module attributes {stable_mosaic.version = 11 : i64} {
  func.func @_upscale2x_kernel(%arg0: i32, %arg1: i32, %arg2: memref<1x8x17x4xbf16, #tpu.memory_space<vmem>>, %arg3: memref<1x1x17x4xbf16, #tpu.memory_space<vmem>>, %arg4: memref<8x48xbf16, #tpu.memory_space<vmem>>, %arg5: memref<1x16xf32, #tpu.memory_space<vmem>>, %arg6: memref<1x8x2x16x16xbf16, #tpu.memory_space<vmem>>, %arg7: memref<144x8xbf16, #tpu.memory_space<vmem>>) attributes {dimension_semantics = [#tpu.dimension_semantics<parallel>, #tpu.dimension_semantics<parallel>], iteration_bounds = array<i64: 2, 2>, scalar_prefetch = 0 : i64, scratch_operands = 1 : i64, tpu.core_type = #tpu.core_type<tc>, window_params = [{transform_indices = @transform_0, window_bounds = array<i64: 1, 8, 17, 4>}, {transform_indices = @transform_1, window_bounds = array<i64: 1, 1, 17, 4>}, {pipeline_mode = #tpu.pipeline_mode<synchronous>, transform_indices = @transform_2, window_bounds = array<i64: 8, 48>}, {pipeline_mode = #tpu.pipeline_mode<synchronous>, transform_indices = @transform_3, window_bounds = array<i64: 1, 16>}, {transform_indices = @transform_4, window_bounds = array<i64: 1, 8, 2, 16, 16>}]} {
    %c0 = arith.constant 0 : index
    %c0_0 = arith.constant 0 : index
    %c0_1 = arith.constant 0 : index
    %c0_2 = arith.constant 0 : index
    %0 = vector.load %arg2[%c0, %c0_0, %c0_1, %c0_2] : memref<1x8x17x4xbf16, #tpu.memory_space<vmem>>, vector<1x8x17x4xbf16>
    %1 = vector.shape_cast %0 : vector<1x8x17x4xbf16> to vector<8x17x4xbf16>
    %c0_3 = arith.constant 0 : index
    %c0_4 = arith.constant 0 : index
    %c0_5 = arith.constant 0 : index
    %c0_6 = arith.constant 0 : index
    %2 = vector.load %arg3[%c0_3, %c0_4, %c0_5, %c0_6] : memref<1x1x17x4xbf16, #tpu.memory_space<vmem>>, vector<1x1x17x4xbf16>
    %3 = vector.shape_cast %2 : vector<1x1x17x4xbf16> to vector<1x17x4xbf16>
    %4 = vector.extract_strided_slice %1 {offsets = [0, 0, 0], sizes = [8, 16, 4], strides = [1, 1, 1]} : vector<8x17x4xbf16> to vector<8x16x4xbf16>
    %5 = vector.shape_cast %4 : vector<8x16x4xbf16> to vector<128x4xbf16>
    %c0_7 = arith.constant 0 : index
    %c0_8 = arith.constant 0 : index
    %6 = vector.load %arg7[%c0_7, %c0_8] : memref<144x8xbf16, #tpu.memory_space<vmem>>, vector<128x4xbf16>
    tpu.vector_store %arg7[%c0_7, %c0_8], %5 {strides = array<i32>} : memref<144x8xbf16, #tpu.memory_space<vmem>>, vector<128x4xbf16>,
    %7 = vector.extract_strided_slice %1 {offsets = [0, 1, 0], sizes = [8, 16, 4], strides = [1, 1, 1]} : vector<8x17x4xbf16> to vector<8x16x4xbf16>
    %8 = vector.shape_cast %7 : vector<8x16x4xbf16> to vector<128x4xbf16>
    %c0_9 = arith.constant 0 : index
    %c4 = arith.constant 4 : index
    %9 = vector.load %arg7[%c0_9, %c4] : memref<144x8xbf16, #tpu.memory_space<vmem>>, vector<128x4xbf16>
    tpu.vector_store %arg7[%c0_9, %c4], %8 {strides = array<i32>} : memref<144x8xbf16, #tpu.memory_space<vmem>>, vector<128x4xbf16>,
    %10 = vector.extract_strided_slice %3 {offsets = [0, 0, 0], sizes = [1, 16, 4], strides = [1, 1, 1]} : vector<1x17x4xbf16> to vector<1x16x4xbf16>
    %11 = vector.shape_cast %10 : vector<1x16x4xbf16> to vector<16x4xbf16>
    %c128 = arith.constant 128 : index
    %c0_10 = arith.constant 0 : index
    %12 = vector.load %arg7[%c128, %c0_10] : memref<144x8xbf16, #tpu.memory_space<vmem>>, vector<16x4xbf16>
    tpu.vector_store %arg7[%c128, %c0_10], %11 {strides = array<i32>} : memref<144x8xbf16, #tpu.memory_space<vmem>>, vector<16x4xbf16>,
    %13 = vector.extract_strided_slice %3 {offsets = [0, 1, 0], sizes = [1, 16, 4], strides = [1, 1, 1]} : vector<1x17x4xbf16> to vector<1x16x4xbf16>
    %14 = vector.shape_cast %13 : vector<1x16x4xbf16> to vector<16x4xbf16>
    %c128_11 = arith.constant 128 : index
    %c4_12 = arith.constant 4 : index
    %15 = vector.load %arg7[%c128_11, %c4_12] : memref<144x8xbf16, #tpu.memory_space<vmem>>, vector<16x4xbf16>
    tpu.vector_store %arg7[%c128_11, %c4_12], %14 {strides = array<i32>} : memref<144x8xbf16, #tpu.memory_space<vmem>>, vector<16x4xbf16>,
    %c0_13 = arith.constant 0 : index
    %c0_14 = arith.constant 0 : index
    %16 = vector.load %arg7[%c0_13, %c0_14] : memref<144x8xbf16, #tpu.memory_space<vmem>>, vector<144x8xbf16>
    %c0_15 = arith.constant 0 : index
    %c0_16 = arith.constant 0 : index
    %17 = vector.load %arg4[%c0_15, %c0_16] : memref<8x48xbf16, #tpu.memory_space<vmem>>, vector<8x48xbf16>
    %cst = arith.constant dense<0.000000e+00> : vector<144x48xf32>
    %18 = tpu.matmul %16, %17, %cst {dimension_numbers = #tpu.dot_dimension_numbers<[1], [0], [0], [1], [0, 0, 1, 1], [], []>} : vector<144x8xbf16>, vector<8x48xbf16>, vector<144x48xf32> -> vector<144x48xf32>
    %c0_17 = arith.constant 0 : index
    %c0_18 = arith.constant 0 : index
    %19 = vector.load %arg5[%c0_17, %c0_18] : memref<1x16xf32, #tpu.memory_space<vmem>>, vector<1x16xf32>
    %20 = vector.extract_strided_slice %18 {offsets = [0, 0], sizes = [128, 16], strides = [1, 1]} : vector<144x48xf32> to vector<128x16xf32>
    %21 = vector.broadcast %19 : vector<1x16xf32> to vector<128x16xf32>
    %22 = arith.addf %20, %21 : vector<128x16xf32>
    %23 = vector.extract_strided_slice %18 {offsets = [0, 16], sizes = [128, 16], strides = [1, 1]} : vector<144x48xf32> to vector<128x16xf32>
    %24 = vector.extract_strided_slice %18 {offsets = [16, 32], sizes = [128, 16], strides = [1, 1]} : vector<144x48xf32> to vector<128x16xf32>
    %25 = arith.addf %23, %24 : vector<128x16xf32>
    %26 = vector.broadcast %19 : vector<1x16xf32> to vector<128x16xf32>
    %27 = arith.addf %25, %26 : vector<128x16xf32>
    %28 = vector.shape_cast %22 : vector<128x16xf32> to vector<8x1x16x16xf32>
    %29 = arith.truncf %28 : vector<8x1x16x16xf32> to vector<8x1x16x16xbf16>
    %c0_19 = arith.constant 0 : index
    %c0_20 = arith.constant 0 : index
    %c0_21 = arith.constant 0 : index
    %c0_22 = arith.constant 0 : index
    %c0_23 = arith.constant 0 : index
    %30 = vector.load %arg6[%c0_19, %c0_20, %c0_21, %c0_22, %c0_23] : memref<1x8x2x16x16xbf16, #tpu.memory_space<vmem>>, vector<1x8x1x16x16xbf16>
    %31 = vector.shape_cast %30 : vector<1x8x1x16x16xbf16> to vector<8x1x16x16xbf16>
    %32 = vector.shape_cast %29 : vector<8x1x16x16xbf16> to vector<1x8x1x16x16xbf16>
    tpu.vector_store %arg6[%c0_19, %c0_20, %c0_21, %c0_22, %c0_23], %32 {strides = array<i32>} : memref<1x8x2x16x16xbf16, #tpu.memory_space<vmem>>, vector<1x8x1x16x16xbf16>,
    %33 = vector.shape_cast %27 : vector<128x16xf32> to vector<8x1x16x16xf32>
    %34 = arith.truncf %33 : vector<8x1x16x16xf32> to vector<8x1x16x16xbf16>
    %c0_24 = arith.constant 0 : index
    %c0_25 = arith.constant 0 : index
    %c1 = arith.constant 1 : index
    %c0_26 = arith.constant 0 : index
    %c0_27 = arith.constant 0 : index
    %35 = vector.load %arg6[%c0_24, %c0_25, %c1, %c0_26, %c0_27] : memref<1x8x2x16x16xbf16, #tpu.memory_space<vmem>>, vector<1x8x1x16x16xbf16>
    %36 = vector.shape_cast %35 : vector<1x8x1x16x16xbf16> to vector<8x1x16x16xbf16>
    %37 = vector.shape_cast %34 : vector<8x1x16x16xbf16> to vector<1x8x1x16x16xbf16>
    tpu.vector_store %arg6[%c0_24, %c0_25, %c1, %c0_26, %c0_27], %37 {strides = array<i32>} : memref<1x8x2x16x16xbf16, #tpu.memory_space<vmem>>, vector<1x8x1x16x16xbf16>,
    return
  }
  func.func @transform_0(%arg0: i32, %arg1: i32) -> (i32, i32, i32, i32) {
    %c0_i32 = arith.constant 0 : i32
    %c0_i32_0 = arith.constant 0 : i32
    %c0_i32_1 = arith.constant 0 : i32
    return %arg0, %arg1, %c0_i32, %c0_i32_0 : i32, i32, i32, i32
  }
  func.func @transform_1(%arg0: i32, %arg1: i32) -> (i32, i32, i32, i32) {
    %c1_i32 = arith.constant 1 : i32
    %0 = arith.addi %arg1, %c1_i32 : i32
    %c8_i32 = arith.constant 8 : i32
    %1 = arith.muli %0, %c8_i32 : i32
    %c0_i32 = arith.constant 0 : i32
    %c0_i32_0 = arith.constant 0 : i32
    %c0_i32_1 = arith.constant 0 : i32
    return %arg0, %1, %c0_i32, %c0_i32_0 : i32, i32, i32, i32
  }
  func.func @transform_2(%arg0: i32, %arg1: i32) -> (i32, i32) {
    %c0_i32 = arith.constant 0 : i32
    %c0_i32_0 = arith.constant 0 : i32
    %c0_i32_1 = arith.constant 0 : i32
    return %c0_i32, %c0_i32_0 : i32, i32
  }
  func.func @transform_3(%arg0: i32, %arg1: i32) -> (i32, i32) {
    %c0_i32 = arith.constant 0 : i32
    %c0_i32_0 = arith.constant 0 : i32
    %c0_i32_1 = arith.constant 0 : i32
    return %c0_i32, %c0_i32_0 : i32, i32
  }
  func.func @transform_4(%arg0: i32, %arg1: i32) -> (i32, i32, i32, i32, i32) {
    %c0_i32 = arith.constant 0 : i32
    %c0_i32_0 = arith.constant 0 : i32
    %c0_i32_1 = arith.constant 0 : i32
    %c0_i32_2 = arith.constant 0 : i32
    return %arg0, %arg1, %c0_i32, %c0_i32_0, %c0_i32_1 : i32, i32, i32, i32, i32
  }
}

</mosaic_0001>

<llo_original>
// kernel: tile.8
$region0: #{tile.8}
  #allocation0 [shape = 's32[1]{0}', space=sflag, size = 0x4, scoped, tag = 'scoped memory for tile.8']
  %s0 = inlined_call_operand.vmem [shape: f32[8], index: 0, kind: input, shape index: {}]
  %s1 = inlined_call_operand.vmem [shape: f32[2,8], index: 1, kind: output, shape index: {}]
  // Predicated region
  $region2: #{tile.8} parent=0 // pred_check
    _
  $region3: #{tile.8} parent=0 // pred_check_branch
    %3 = sbr.rel (0) target = $region5
  $region4: #{tile.8} parent=0 // pred_region
    _
  $region5: #{tile.8} parent=0 // pred_fallthru
    _
  %v4 = vld [vmem:[%s0] ss:$0 sm:$0xff]
  %5 = vst [vmem:[%s1] sm:$0x3] %v4

// kernel: tile.9
$region0: #{tile.9}
  %s0 = inlined_call_operand.vmem [shape: f32[2,8], index: 0, kind: input, shape index: {}]
  %s1 = inlined_call_operand.vmem [shape: f32[1,16], index: 1, kind: output, shape index: {}]
  $region1: #{tile.9} parent=0
    #allocation0 [shape = 'u8[4096]{0}', space=vmem, size = 0x1000, scoped, tag = 'scoped mem for output reshape']
    #allocation1 [shape = 'u8[4096]{0}', space=vmem, size = 0x1000, scoped, tag = 'scoped mem for input reshape']
    %s3 = ssub.s32 4, 1
    %v4 = vld [vmem:[%s0] sm:%s3]
    %5 = vst [vmem:[#allocation1] sm:%s3] %v4
    %v6 = vld [vmem:[#allocation1] sm:$0x1]
    %vm7 = vcmask 64512
    %8 = vst.msk [vmem:[#allocation0] sm:$0x1] %vm7, %v6
    %s9 = scalar_lea.vmem [#allocation1], 1
    %v10 = vld [vmem:[%s9] sm:$0x1]
    %11 = vrot.lane.b32.xlu0 %v10, 8
    %v12 = vpop.permute.xlu0 %11
    %vm13 = vcmask 130112
    %14 = vst.msk [vmem:[#allocation0] sm:$0x1] %vm13, %v12
    %s16 = ssub.s32 2, 1
    %v17 = vld [vmem:[#allocation0] sm:%s16]
    %s19 = ssub.s32 2, 1
    %20 = vst [vmem:[%s1] sm:%s19] %v17

// kernel: upscale_twice.1
$region0: #{upscale_twice.1}
  #allocation0 [shape = 'u32[]', space=smem, size = 0x4, offset = 0x4, fixed_abs, tag = 'smem constant byte address 0x4 - core index']
  #allocation1 [shape = 'u32[72,128]{1,0:T(1,128)}', space=vmem, size = 0x9000, scoped, tag = 'internal scratch']
  #allocation2 [shape = 'bf16[144,8]{1,0:T(8,128)(2,1)}', space=vmem, size = 0x9000, scoped, tag = 'scratch operand']
  %s0 = inlined_call_operand.vmem [shape: bf16[2,17,17,4], index: 0, kind: input, shape index: {}, may-alias: {0,1}]
  %s1 = inlined_call_operand.vmem [shape: bf16[2,17,17,4], index: 1, kind: input, shape index: {}, may-alias: {0,1}]
  %s2 = inlined_call_operand.vmem [shape: bf16[8,48], index: 2, kind: input, shape index: {}]
  %s3 = inlined_call_operand.vmem [shape: f32[1,16], index: 3, kind: input, shape index: {}]
  %s4 = inlined_call_operand.vmem [shape: bf16[2,16,2,16,16], index: 4, kind: output, shape index: {}]
  %s5 = sld [smem:[#allocation0]]
  $region49: #{upscale_twice.1} parent=0
    _
  %s7 = ssub.s32 1, %s5
  %s8 = scalar_select 0, %s7, %s5
  loop: start=0, step=1, limit=6
  $region2: #{upscale_twice.1} parent=0 // loop_pre_header
    _
  $region3: #{upscale_twice.1} parent=0 // loop_header
    %s10 = sphi 0, %s14
    %p11 = scmp.ge.s32.totalorder %s10, 6
    %s17 = sphi 0, %s29
    %s18 = sphi 0, %s25
    %s19 = sphi 0, %s17
    %s20 = sphi 0, %s18
    %s21 = sphi 0, %s19
    %s22 = sphi 0, %s20
    %s34 = sphi 0, %s36
    %s37 = sphi 0, %s34
    %s38 = sphi 0, %s37
    %s54 = sphi 0, %s38
    %s66 = sphi 0, %s68
    %s69 = sphi 0, %s66
    %s70 = sphi 0, %s69
    %s86 = sphi 0, %s70
    %s90 = sphi 0, %s90
    %s92 = sphi 0, %s90
    %s93 = sphi 0, %s92
    %s107 = sphi 0, %s93
    %s111 = sphi 0, %s111
    %s113 = sphi 0, %s111
    %s114 = sphi 0, %s113
    %s128 = sphi 0, %s114
    %s136 = sphi 0, %s138
    %s139 = sphi 0, %s136
    %s140 = sphi 0, %s139
    %s156 = sphi 0, %s140
  $region4: #{upscale_twice.1} parent=0 // loop_header_branch
    %13 = sbr.rel (%p11) target = $region8
  $region5: #{upscale_twice.1} parent=0 // loop_body
    %s15 = ssub.s32 %s10, 1
    %s16 = ssub.s32 %s10, 2
    %s23 = sadd.s32 1, %s18
    %p24 = scmp.ge.s32.totalorder %s23, 2
    %s25 = scalar_select %p24, 0, %s23
    %s26 = sadd.s32 1, %s17
    %s27 = scalar_select %p24, %s26, %s17
    %p28 = scmp.ge.s32.totalorder %s27, 2
    %s29 = scalar_select %p28, 0, %s27
    %s30 = ssub.s32 %s17, %s29
    %s31 = ssub.s32 %s18, %s25
    %s32 = sor.u32 %s30, %s31
    %p33 = scmp.eq.s32.totalorder %s32, 0
    %s35 = sadd.s32 %s34, 1
    %s36 = scalar_select %p33, %s34, %s35
    %p39 = pneg %p33
    %p40 = scmp.eq.s32.totalorder %s10, 3
    %p41 = por %p39, %p40
    %p42 = scmp.ne.s32.totalorder %s34, %s37
    %p43 = scmp.eq.s32.totalorder %s10, 0
    %p44 = por %p42, %p43
    %p45 = scmp.ne.s32.totalorder %s34, %s37
    %p46 = scmp.eq.s32.totalorder %s15, 3
    %p47 = por %p45, %p46
    %p48 = scmp.ne.s32.totalorder %s37, %s38
    %p49 = scmp.eq.s32.totalorder %s15, 0
    %p50 = por %p48, %p49
    %p51 = scmp.ne.s32.totalorder %s37, %s38
    %p52 = scmp.eq.s32.totalorder %s16, 3
    %p53 = por %p51, %p52
    %p55 = scmp.ne.s32.totalorder %s38, %s54
    %p56 = scmp.eq.s32.totalorder %s16, 0
    %p57 = por %p55, %p56
    %s58 = sadd.s32 %s18, 1
    %s59 = smul.u32 %s58, 8
    %s60 = sadd.s32 %s25, 1
    %s61 = smul.u32 %s60, 8
    %s62 = ssub.s32 %s17, %s29
    %s63 = ssub.s32 %s59, %s61
    %s64 = sor.u32 %s62, %s63
    %p65 = scmp.eq.s32.totalorder %s64, 0
    %s67 = sadd.s32 %s66, 1
    %s68 = scalar_select %p65, %s66, %s67
    %p71 = pneg %p65
    %p72 = scmp.eq.s32.totalorder %s10, 3
    %p73 = por %p71, %p72
    %p74 = scmp.ne.s32.totalorder %s66, %s69
    %p75 = scmp.eq.s32.totalorder %s10, 0
    %p76 = por %p74, %p75
    %p77 = scmp.ne.s32.totalorder %s66, %s69
    %p78 = scmp.eq.s32.totalorder %s15, 3
    %p79 = por %p77, %p78
    %p80 = scmp.ne.s32.totalorder %s69, %s70
    %p81 = scmp.eq.s32.totalorder %s15, 0
    %p82 = por %p80, %p81
    %p83 = scmp.ne.s32.totalorder %s69, %s70
    %p84 = scmp.eq.s32.totalorder %s16, 3
    %p85 = por %p83, %p84
    %p87 = scmp.ne.s32.totalorder %s70, %s86
    %p88 = scmp.eq.s32.totalorder %s16, 0
    %p89 = por %p87, %p88
    %s91 = sadd.s32 %s90, 1
    %p94 = scmp.eq.s32.totalorder %s10, 3
    %p95 = scmp.ne.s32.totalorder %s90, %s92
    %p96 = scmp.eq.s32.totalorder %s10, 0
    %p97 = por %p95, %p96
    %p98 = scmp.ne.s32.totalorder %s90, %s92
    %p99 = scmp.eq.s32.totalorder %s15, 3
    %p100 = por %p98, %p99
    %p101 = scmp.ne.s32.totalorder %s92, %s93
    %p102 = scmp.eq.s32.totalorder %s15, 0
    %p103 = por %p101, %p102
    %p104 = scmp.ne.s32.totalorder %s92, %s93
    %p105 = scmp.eq.s32.totalorder %s16, 3
    %p106 = por %p104, %p105
    %p108 = scmp.ne.s32.totalorder %s93, %s107
    %p109 = scmp.eq.s32.totalorder %s16, 0
    %p110 = por %p108, %p109
    %s112 = sadd.s32 %s111, 1
    %p115 = scmp.eq.s32.totalorder %s10, 3
    %p116 = scmp.ne.s32.totalorder %s111, %s113
    %p117 = scmp.eq.s32.totalorder %s10, 0
    %p118 = por %p116, %p117
    %p119 = scmp.ne.s32.totalorder %s111, %s113
    %p120 = scmp.eq.s32.totalorder %s15, 3
    %p121 = por %p119, %p120
    %p122 = scmp.ne.s32.totalorder %s113, %s114
    %p123 = scmp.eq.s32.totalorder %s15, 0
    %p124 = por %p122, %p123
    %p125 = scmp.ne.s32.totalorder %s113, %s114
    %p126 = scmp.eq.s32.totalorder %s16, 3
    %p127 = por %p125, %p126
    %p129 = scmp.ne.s32.totalorder %s114, %s128
    %p130 = scmp.eq.s32.totalorder %s16, 0
    %p131 = por %p129, %p130
    %s132 = ssub.s32 %s17, %s29
    %s133 = ssub.s32 %s18, %s25
    %s134 = sor.u32 %s132, %s133
    %p135 = scmp.eq.s32.totalorder %s134, 0
    %s137 = sadd.s32 %s136, 1
    %s138 = scalar_select %p135, %s136, %s137
    %p141 = pneg %p135
    %p142 = scmp.eq.s32.totalorder %s10, 3
    %p143 = por %p141, %p142
    %p144 = scmp.ne.s32.totalorder %s136, %s139
    %p145 = scmp.eq.s32.totalorder %s10, 0
    %p146 = por %p144, %p145
    %p147 = scmp.ne.s32.totalorder %s136, %s139
    %p148 = scmp.eq.s32.totalorder %s15, 3
    %p149 = por %p147, %p148
    %p150 = scmp.ne.s32.totalorder %s139, %s140
    %p151 = scmp.eq.s32.totalorder %s15, 0
    %p152 = por %p150, %p151
    %p153 = scmp.ne.s32.totalorder %s139, %s140
    %p154 = scmp.eq.s32.totalorder %s16, 3
    %p155 = por %p153, %p154
    %p157 = scmp.ne.s32.totalorder %s140, %s156
    %p158 = scmp.eq.s32.totalorder %s16, 0
    %p159 = por %p157, %p158
    %p160 = scmp.le.s32.totalorder 1, %s10
    %p161 = scmp.lt.s32.totalorder %s10, 5
    %p162 = pnand %p160, %p161
    %p163 = pneg %p162
    // Predicated region
    $region9: #{upscale_twice.1} parent=5 // pred_check
      _
    $region10: #{upscale_twice.1} parent=5 // pred_check_branch
      %165 = sbr.rel (%p162) target = $region12
    $region11: #{upscale_twice.1} parent=5 // pred_region
      %s166 = ssub.s32 %s10, 1
      // Predicated region
      $region13: #{upscale_twice.1} parent=11 // pred_check
        %p167 = pneg %p103
      $region14: #{upscale_twice.1} parent=11 // pred_check_branch
        %169 = sbr.rel (%p167) target = $region16
      $region15: #{upscale_twice.1} parent=11 // pred_region
        _
      $region16: #{upscale_twice.1} parent=11 // pred_fallthru
        _
      // Predicated region
      $region17: #{upscale_twice.1} parent=11 // pred_check
        %p170 = pneg %p124
      $region18: #{upscale_twice.1} parent=11 // pred_check_branch
        %172 = sbr.rel (%p170) target = $region20
      $region19: #{upscale_twice.1} parent=11 // pred_region
        _
      $region20: #{upscale_twice.1} parent=11 // pred_fallthru
        _
    $region12: #{upscale_twice.1} parent=5 // pred_fallthru
      _
    %p173 = scmp.lt.s32.totalorder %s10, 4
    // Predicated region
    $region21: #{upscale_twice.1} parent=5 // pred_check
      %p174 = pneg %p173
    $region22: #{upscale_twice.1} parent=5 // pred_check_branch
      %176 = sbr.rel (%p174) target = $region24
    $region23: #{upscale_twice.1} parent=5 // pred_region
      // Predicated region
      $region25: #{upscale_twice.1} parent=23 // pred_check
        %p177 = pneg %p44
      $region26: #{upscale_twice.1} parent=23 // pred_check_branch
        %179 = sbr.rel (%p177) target = $region28
      $region27: #{upscale_twice.1} parent=23 // pred_region
        %s180 = smul.u32 8, %s18
        %s181 = ssub.s32 17, %s180
        %p182 = scmp.lt.s32.totalorder %s181, 8
        %s183 = scalar_select %p182, %s181, 8
        %s184 = smul.u32 4, %s183
        %s185 = smul.u32 %s184, 3
        %p186 = scmp.lt.s32.totalorder %s17, 1
        %s187 = scalar_select %p186, %s17, 1
        %p188 = scmp.lt.s32.totalorder %s180, 16
        %s189 = scalar_select %p188, %s180, 16
        %s190 = smul.addr %s189, 3
        %s191 = smul.addr %s187, 51
        %s192 = sadd.s32 %s190, %s191
        %s193 = smul.addr %s192, 4
        %s194 = scalar_lea.vmem %s0, %s193
        %s195 = smul.u32 8, %s18
        %s196 = ssub.s32 17, %s195
        %p197 = scmp.lt.s32.totalorder %s196, 8
        %s198 = scalar_select %p197, %s196, 8
        %s199 = smul.u32 4, %s198
        %s200 = smul.u32 %s199, 3
      $region28: #{upscale_twice.1} parent=23 // pred_fallthru
        _
      // Predicated region
      $region29: #{upscale_twice.1} parent=23 // pred_check
        %p201 = pneg %p76
      $region30: #{upscale_twice.1} parent=23 // pred_check_branch
        %203 = sbr.rel (%p201) target = $region32
      $region31: #{upscale_twice.1} parent=23 // pred_region
        %s204 = sadd.s32 %s18, 1
        %s205 = smul.u32 %s204, 8
        %p206 = scmp.lt.s32.totalorder %s17, 1
        %s207 = scalar_select %p206, %s17, 1
        %p208 = scmp.lt.s32.totalorder %s205, 16
        %s209 = scalar_select %p208, %s205, 16
        %s210 = smul.addr %s209, 3
        %s211 = smul.addr %s207, 51
        %s212 = sadd.s32 %s210, %s211
        %s213 = smul.addr %s212, 4
        %s214 = scalar_lea.vmem %s1, %s213
        %s215 = sadd.s32 %s18, 1
        %s216 = smul.u32 %s215, 8
      $region32: #{upscale_twice.1} parent=23 // pred_fallthru
        _
    $region24: #{upscale_twice.1} parent=5 // pred_fallthru
      _
    %p217 = scmp.le.s32.totalorder 1, %s10
    %p218 = scmp.lt.s32.totalorder %s10, 5
    %p219 = pnand %p217, %p218
    %p220 = pneg %p219
    // Predicated region
    $region33: #{upscale_twice.1} parent=5 // pred_check
      _
    $region34: #{upscale_twice.1} parent=5 // pred_check_branch
      %222 = sbr.rel (%p219) target = $region36
    $region35: #{upscale_twice.1} parent=5 // pred_region
      %s223 = ssub.s32 %s10, 1
      %s224 = smul.u32 8, %s20
      %s225 = ssub.s32 17, %s224
      %p226 = scmp.lt.s32.totalorder %s225, 8
      %s227 = scalar_select %p226, %s225, 8
      %s228 = smul.u32 4, %s227
      %s229 = smul.u32 %s228, 3
      %p230 = scmp.lt.s32.totalorder %s19, 1
      %s231 = scalar_select %p230, %s19, 1
      %p232 = scmp.lt.s32.totalorder %s224, 16
      %s233 = scalar_select %p232, %s224, 16
      %s234 = smul.addr %s233, 3
      %s235 = smul.addr %s231, 51
      %s236 = sadd.s32 %s234, %s235
      %s237 = smul.addr %s236, 4
      %s238 = scalar_lea.vmem %s0, %s237
      %p239 = pneg %p50
      %p240 = pneg %p47
      %s241 = sadd.s32 %s20, 1
      %s242 = smul.u32 %s241, 8
      %p243 = scmp.lt.s32.totalorder %s19, 1
      %s244 = scalar_select %p243, %s19, 1
      %p245 = scmp.lt.s32.totalorder %s242, 16
      %s246 = scalar_select %p245, %s242, 16
      %s247 = smul.addr %s246, 3
      %s248 = smul.addr %s244, 51
      %s249 = sadd.s32 %s247, %s248
      %s250 = smul.addr %s249, 4
      %s251 = scalar_lea.vmem %s1, %s250
      %p252 = pneg %p82
      %p253 = pneg %p79
      %p254 = pneg %p103
      %p255 = pneg %p100
      %p256 = pneg %p124
      %p257 = pneg %p121
      %p258 = pneg %p152
      %p259 = pneg %p149
      %s260 = smul.u32 8, %s20
      %p261 = scmp.lt.s32.totalorder %s19, 1
      %s262 = scalar_select %p261, %s19, 1
      %p263 = scmp.lt.s32.totalorder %s260, 15
      %s264 = scalar_select %p263, %s260, 15
      %s265 = smul.addr %s264, 4
      %s266 = smul.addr %s262, 64
      %s267 = sadd.s32 %s265, %s266
      %s268 = smul.addr %s267, 4
      %s269 = scalar_lea.vmem %s4, %s268
      %s270 = smul.u32 8, %s20
      %s271 = ssub.s32 17, %s270
      %p272 = scmp.lt.s32.totalorder %s271, 8
      %s273 = scalar_select %p272, %s271, 8
      %s274 = smul.u32 4, %s273
      %s275 = smul.u32 %s274, 3
      %p276 = scmp.lt.s32.totalorder %s19, 1
      %s277 = scalar_select %p276, %s19, 1
      %p278 = scmp.lt.s32.totalorder %s270, 16
      %s279 = scalar_select %p278, %s270, 16
      %s280 = smul.addr %s279, 3
      %s281 = smul.addr %s277, 51
      %s282 = sadd.s32 %s280, %s281
      %s283 = smul.addr %s282, 4
      %s284 = scalar_lea.vmem %s0, %s283
      %s285 = smul.u32 8, %s20
      %s286 = ssub.s32 17, %s285
      %p287 = scmp.lt.s32.totalorder %s286, 8
      %s288 = scalar_select %p287, %s286, 8
      %s289 = smul.u32 4, %s288
      %s290 = smul.u32 %s289, 3
      %s291 = sadd.s32 %s20, 1
      %s292 = smul.u32 %s291, 8
      %p293 = scmp.lt.s32.totalorder %s19, 1
      %s294 = scalar_select %p293, %s19, 1
      %p295 = scmp.lt.s32.totalorder %s292, 16
      %s296 = scalar_select %p295, %s292, 16
      %s297 = smul.addr %s296, 3
      %s298 = smul.addr %s294, 51
      %s299 = sadd.s32 %s297, %s298
      %s300 = smul.addr %s299, 4
      %s301 = scalar_lea.vmem %s1, %s300
      %s302 = sadd.s32 %s20, 1
      %s303 = smul.u32 %s302, 8
      %s304 = smul.u32 8, %s20
      %p305 = scmp.lt.s32.totalorder %s19, 1
      %s306 = scalar_select %p305, %s19, 1
      %p307 = scmp.lt.s32.totalorder %s304, 15
      %s308 = scalar_select %p307, %s304, 15
      %s309 = smul.addr %s308, 4
      %s310 = smul.addr %s306, 64
      %s311 = sadd.s32 %s309, %s310
      %s312 = smul.addr %s311, 4
      %s313 = scalar_lea.vmem %s4, %s312
      %s314 = smul.u32 8, %s20
      %v316 = vld [vmem:[%s284] sm:$0xf]
      %v317 = vld [vmem:[%s284 + $0x4] sm:$0xf]
      %v318 = vld [vmem:[%s284 + $0x8] sm:$0x1]
      %v319 = vld [vmem:[%s284 + $0xc] sm:$0xf]
      %v320 = vld [vmem:[%s284 + $0x10] sm:$0xf]
      %v321 = vld [vmem:[%s284 + $0x14] sm:$0x1]
      %v322 = vld [vmem:[%s284 + $0x18] sm:$0xf]
      %v323 = vld [vmem:[%s284 + $0x1c] sm:$0xf]
      %v324 = vld [vmem:[%s284 + $0x20] sm:$0x1]
      %v325 = vld [vmem:[%s284 + $0x24] sm:$0xf]
      %v326 = vld [vmem:[%s284 + $0x28] sm:$0xf]
      %v327 = vld [vmem:[%s284 + $0x2c] sm:$0x1]
      %v328 = vld [vmem:[%s284 + $0x30] sm:$0xf]
      %v329 = vld [vmem:[%s284 + $0x34] sm:$0xf]
      %v330 = vld [vmem:[%s284 + $0x38] sm:$0x1]
      %v331 = vld [vmem:[%s284 + $0x3c] sm:$0xf]
      %v332 = vld [vmem:[%s284 + $0x40] sm:$0xf]
      %v333 = vld [vmem:[%s284 + $0x44] sm:$0x1]
      %v334 = vld [vmem:[%s284 + $0x48] sm:$0xf]
      %v335 = vld [vmem:[%s284 + $0x4c] sm:$0xf]
      %v336 = vld [vmem:[%s284 + $0x50] sm:$0x1]
      %v337 = vld [vmem:[%s284 + $0x54] sm:$0xf]
      %v338 = vld [vmem:[%s284 + $0x58] sm:$0xf]
      %v339 = vld [vmem:[%s284 + $0x5c] sm:$0x1]
      %v340 = vld [vmem:[%s301] sm:$0xf]
      %v341 = vld [vmem:[%s301 + $0x4] sm:$0xf]
      %v342 = vld [vmem:[%s301 + $0x8] sm:$0x1]
      %vm343 = vcmask 27648
      %344 = vst.msk [vmem:[#allocation2] sm:$0xf] %vm343, %v316
      %345 = vst.msk [vmem:[#allocation2 + $0x4] sm:$0xf] %vm343, %v317
      %346 = vst.msk [vmem:[#allocation2 + $0x8] sm:$0xf] %vm343, %v319
      %347 = vst.msk [vmem:[#allocation2 + $0xc] sm:$0xf] %vm343, %v320
      %348 = vst.msk [vmem:[#allocation2 + $0x10] sm:$0xf] %vm343, %v322
      %349 = vst.msk [vmem:[#allocation2 + $0x14] sm:$0xf] %vm343, %v323
      %350 = vst.msk [vmem:[#allocation2 + $0x18] sm:$0xf] %vm343, %v325
      %351 = vst.msk [vmem:[#allocation2 + $0x1c] sm:$0xf] %vm343, %v326
      %352 = vst.msk [vmem:[#allocation2 + $0x20] sm:$0xf] %vm343, %v328
      %353 = vst.msk [vmem:[#allocation2 + $0x24] sm:$0xf] %vm343, %v329
      %354 = vst.msk [vmem:[#allocation2 + $0x28] sm:$0xf] %vm343, %v331
      %355 = vst.msk [vmem:[#allocation2 + $0x2c] sm:$0xf] %vm343, %v332
      %356 = vst.msk [vmem:[#allocation2 + $0x30] sm:$0xf] %vm343, %v334
      %357 = vst.msk [vmem:[#allocation2 + $0x34] sm:$0xf] %vm343, %v335
      %358 = vst.msk [vmem:[#allocation2 + $0x38] sm:$0xf] %vm343, %v337
      %359 = vst.msk [vmem:[#allocation2 + $0x3c] sm:$0xf] %vm343, %v338
      %vm360 = vsmask.f32 3328
      %vm361 = vsmask.f32 7440
      %vm362 = vmor %vm360, %vm361
      %v364 = vshrl.u32 %v316, 16
      %v366 = vrot.slane %v364, 4
      %v367 = vshll.u32 %v316, 16
      %v369 = vrot.slane %v367, 5
      %v370 = vor.u32 %v366, %v369
      %v371 = vrot.slane %v370, 4
      %v373 = vshll.u32 %v317, 16
      %v375 = vrot.slane %v373, 5
      %v376 = vsel %vm362, %v371, %v375
      %v377 = vshrl.u32 %v317, 16
      %v379 = vrot.slane %v377, 4
      %v380 = vor.u32 %v379, %v375
      %v381 = vrot.slane %v380, 4
      %v383 = vshll.u32 %v318, 16
      %v385 = vrot.slane %v383, 5
      %v386 = vsel %vm362, %v381, %v385
      %v388 = vshrl.u32 %v319, 16
      %v390 = vrot.slane %v388, 4
      %v391 = vshll.u32 %v319, 16
      %v393 = vrot.slane %v391, 5
      %v394 = vor.u32 %v390, %v393
      %v395 = vrot.slane %v394, 4
      %v397 = vshll.u32 %v320, 16
      %v399 = vrot.slane %v397, 5
      %v400 = vsel %vm362, %v395, %v399
      %v401 = vshrl.u32 %v320, 16
      %v403 = vrot.slane %v401, 4
      %v404 = vor.u32 %v403, %v399
      %v405 = vrot.slane %v404, 4
      %v407 = vshll.u32 %v321, 16
      %v409 = vrot.slane %v407, 5
      %v410 = vsel %vm362, %v405, %v409
      %v412 = vshrl.u32 %v322, 16
      %v414 = vrot.slane %v412, 4
      %v415 = vshll.u32 %v322, 16
      %v417 = vrot.slane %v415, 5
      %v418 = vor.u32 %v414, %v417
      %v419 = vrot.slane %v418, 4
      %v421 = vshll.u32 %v323, 16
      %v423 = vrot.slane %v421, 5
      %v424 = vsel %vm362, %v419, %v423
      %v425 = vshrl.u32 %v323, 16
      %v427 = vrot.slane %v425, 4
      %v428 = vor.u32 %v427, %v423
      %v429 = vrot.slane %v428, 4
      %v431 = vshll.u32 %v324, 16
      %v433 = vrot.slane %v431, 5
      %v434 = vsel %vm362, %v429, %v433
      %v436 = vshrl.u32 %v325, 16
      %v438 = vrot.slane %v436, 4
      %v439 = vshll.u32 %v325, 16
      %v441 = vrot.slane %v439, 5
      %v442 = vor.u32 %v438, %v441
      %v443 = vrot.slane %v442, 4
      %v445 = vshll.u32 %v326, 16
      %v447 = vrot.slane %v445, 5
      %v448 = vsel %vm362, %v443, %v447
      %v449 = vshrl.u32 %v326, 16
      %v451 = vrot.slane %v449, 4
      %v452 = vor.u32 %v451, %v447
      %v453 = vrot.slane %v452, 4
      %v455 = vshll.u32 %v327, 16
      %v457 = vrot.slane %v455, 5
      %v458 = vsel %vm362, %v453, %v457
      %v460 = vshrl.u32 %v328, 16
      %v462 = vrot.slane %v460, 4
      %v463 = vshll.u32 %v328, 16
      %v465 = vrot.slane %v463, 5
      %v466 = vor.u32 %v462, %v465
      %v467 = vrot.slane %v466, 4
      %v469 = vshll.u32 %v329, 16
      %v471 = vrot.slane %v469, 5
      %v472 = vsel %vm362, %v467, %v471
      %v473 = vshrl.u32 %v329, 16
      %v475 = vrot.slane %v473, 4
      %v476 = vor.u32 %v475, %v471
      %v477 = vrot.slane %v476, 4
      %v479 = vshll.u32 %v330, 16
      %v481 = vrot.slane %v479, 5
      %v482 = vsel %vm362, %v477, %v481
      %v484 = vshrl.u32 %v331, 16
      %v486 = vrot.slane %v484, 4
      %v487 = vshll.u32 %v331, 16
      %v489 = vrot.slane %v487, 5
      %v490 = vor.u32 %v486, %v489
      %v491 = vrot.slane %v490, 4
      %v493 = vshll.u32 %v332, 16
      %v495 = vrot.slane %v493, 5
      %v496 = vsel %vm362, %v491, %v495
      %v497 = vshrl.u32 %v332, 16
      %v499 = vrot.slane %v497, 4
      %v500 = vor.u32 %v499, %v495
      %v501 = vrot.slane %v500, 4
      %v503 = vshll.u32 %v333, 16
      %v505 = vrot.slane %v503, 5
      %v506 = vsel %vm362, %v501, %v505
      %v508 = vshrl.u32 %v334, 16
      %v510 = vrot.slane %v508, 4
      %v511 = vshll.u32 %v334, 16
      %v513 = vrot.slane %v511, 5
      %v514 = vor.u32 %v510, %v513
      %v515 = vrot.slane %v514, 4
      %v517 = vshll.u32 %v335, 16
      %v519 = vrot.slane %v517, 5
      %v520 = vsel %vm362, %v515, %v519
      %v521 = vshrl.u32 %v335, 16
      %v523 = vrot.slane %v521, 4
      %v524 = vor.u32 %v523, %v519
      %v525 = vrot.slane %v524, 4
      %v527 = vshll.u32 %v336, 16
      %v529 = vrot.slane %v527, 5
      %v530 = vsel %vm362, %v525, %v529
      %v532 = vshrl.u32 %v337, 16
      %v534 = vrot.slane %v532, 4
      %v535 = vshll.u32 %v337, 16
      %v537 = vrot.slane %v535, 5
      %v538 = vor.u32 %v534, %v537
      %v539 = vrot.slane %v538, 4
      %v541 = vshll.u32 %v338, 16
      %v543 = vrot.slane %v541, 5
      %v544 = vsel %vm362, %v539, %v543
      %v545 = vshrl.u32 %v338, 16
      %v547 = vrot.slane %v545, 4
      %v548 = vor.u32 %v547, %v543
      %v549 = vrot.slane %v548, 4
      %v551 = vshll.u32 %v339, 16
      %v553 = vrot.slane %v551, 5
      %v554 = vsel %vm362, %v549, %v553
      %555 = vrot.lane.b32.xlu0 %v376, 4
      %v556 = vpop.permute.xlu0 %555
      %557 = vrot.lane.b32.xlu0 %v386, 4
      %v558 = vpop.permute.xlu0 %557
      %559 = vrot.lane.b32.xlu0 %v400, 4
      %v560 = vpop.permute.xlu0 %559
      %561 = vrot.lane.b32.xlu0 %v410, 4
      %v562 = vpop.permute.xlu0 %561
      %563 = vrot.lane.b32.xlu0 %v424, 4
      %v564 = vpop.permute.xlu0 %563
      %565 = vrot.lane.b32.xlu0 %v434, 4
      %v566 = vpop.permute.xlu0 %565
      %567 = vrot.lane.b32.xlu0 %v448, 4
      %v568 = vpop.permute.xlu0 %567
      %569 = vrot.lane.b32.xlu0 %v458, 4
      %v570 = vpop.permute.xlu0 %569
      %571 = vrot.lane.b32.xlu0 %v472, 4
      %v572 = vpop.permute.xlu0 %571
      %573 = vrot.lane.b32.xlu0 %v482, 4
      %v574 = vpop.permute.xlu0 %573
      %575 = vrot.lane.b32.xlu0 %v496, 4
      %v576 = vpop.permute.xlu0 %575
      %577 = vrot.lane.b32.xlu0 %v506, 4
      %v578 = vpop.permute.xlu0 %577
      %579 = vrot.lane.b32.xlu0 %v520, 4
      %v580 = vpop.permute.xlu0 %579
      %581 = vrot.lane.b32.xlu0 %v530, 4
      %v582 = vpop.permute.xlu0 %581
      %583 = vrot.lane.b32.xlu0 %v544, 4
      %v584 = vpop.permute.xlu0 %583
      %585 = vrot.lane.b32.xlu0 %v554, 4
      %v586 = vpop.permute.xlu0 %585
      %vm603 = vcmask 60448
      %604 = vst.msk [vmem:[#allocation2] sm:$0xf] %vm603, %v556
      %605 = vst.msk [vmem:[#allocation2 + $0x4] sm:$0xf] %vm603, %v558
      %606 = vst.msk [vmem:[#allocation2 + $0x8] sm:$0xf] %vm603, %v560
      %607 = vst.msk [vmem:[#allocation2 + $0xc] sm:$0xf] %vm603, %v562
      %608 = vst.msk [vmem:[#allocation2 + $0x10] sm:$0xf] %vm603, %v564
      %609 = vst.msk [vmem:[#allocation2 + $0x14] sm:$0xf] %vm603, %v566
      %610 = vst.msk [vmem:[#allocation2 + $0x18] sm:$0xf] %vm603, %v568
      %611 = vst.msk [vmem:[#allocation2 + $0x1c] sm:$0xf] %vm603, %v570
      %612 = vst.msk [vmem:[#allocation2 + $0x20] sm:$0xf] %vm603, %v572
      %613 = vst.msk [vmem:[#allocation2 + $0x24] sm:$0xf] %vm603, %v574
      %614 = vst.msk [vmem:[#allocation2 + $0x28] sm:$0xf] %vm603, %v576
      %615 = vst.msk [vmem:[#allocation2 + $0x2c] sm:$0xf] %vm603, %v578
      %616 = vst.msk [vmem:[#allocation2 + $0x30] sm:$0xf] %vm603, %v580
      %617 = vst.msk [vmem:[#allocation2 + $0x34] sm:$0xf] %vm603, %v582
      %618 = vst.msk [vmem:[#allocation2 + $0x38] sm:$0xf] %vm603, %v584
      %619 = vst.msk [vmem:[#allocation2 + $0x3c] sm:$0xf] %vm603, %v586
      %620 = vst.msk [vmem:[#allocation2 + $0x40] sm:$0xf] %vm343, %v340
      %621 = vst.msk [vmem:[#allocation2 + $0x44] sm:$0xf] %vm343, %v341
      %v623 = vshrl.u32 %v340, 16
      %v625 = vrot.slane %v623, 4
      %v626 = vshll.u32 %v340, 16
      %v628 = vrot.slane %v626, 5
      %v629 = vor.u32 %v625, %v628
      %v630 = vrot.slane %v629, 4
      %v632 = vshll.u32 %v341, 16
      %v634 = vrot.slane %v632, 5
      %v635 = vsel %vm362, %v630, %v634
      %v636 = vshrl.u32 %v341, 16
      %v638 = vrot.slane %v636, 4
      %v639 = vor.u32 %v638, %v634
      %v640 = vrot.slane %v639, 4
      %v642 = vshll.u32 %v342, 16
      %v644 = vrot.slane %v642, 5
      %v645 = vsel %vm362, %v640, %v644
      %646 = vrot.lane.b32.xlu0 %v635, 4
      %v647 = vpop.permute.xlu0 %646
      %648 = vrot.lane.b32.xlu0 %v645, 4
      %v649 = vpop.permute.xlu0 %648
      %652 = vst.msk [vmem:[#allocation2 + $0x40] sm:$0xf] %vm603, %v647
      %653 = vst.msk [vmem:[#allocation2 + $0x44] sm:$0xf] %vm603, %v649
      %v654 = vld [vmem:[#allocation2] sm:$0xf]
      %v655 = vld [vmem:[#allocation2 + $0x4] sm:$0xf]
      %v656 = vld [vmem:[#allocation2 + $0x8] sm:$0xf]
      %v657 = vld [vmem:[#allocation2 + $0xc] sm:$0xf]
      %v658 = vld [vmem:[#allocation2 + $0x10] sm:$0xf]
      %v659 = vld [vmem:[#allocation2 + $0x14] sm:$0xf]
      %v660 = vld [vmem:[#allocation2 + $0x18] sm:$0xf]
      %v661 = vld [vmem:[#allocation2 + $0x1c] sm:$0xf]
      %v662 = vld [vmem:[#allocation2 + $0x20] sm:$0xf]
      %v663 = vld [vmem:[#allocation2 + $0x24] sm:$0xf]
      %v664 = vld [vmem:[#allocation2 + $0x28] sm:$0xf]
      %v665 = vld [vmem:[#allocation2 + $0x2c] sm:$0xf]
      %v666 = vld [vmem:[#allocation2 + $0x30] sm:$0xf]
      %v667 = vld [vmem:[#allocation2 + $0x34] sm:$0xf]
      %v668 = vld [vmem:[#allocation2 + $0x38] sm:$0xf]
      %v669 = vld [vmem:[#allocation2 + $0x3c] sm:$0xf]
      %v670 = vld [vmem:[#allocation2 + $0x40] sm:$0xf]
      %v671 = vld [vmem:[#allocation2 + $0x44] sm:$0xf]
      %v672 = vld [vmem:[%s2] sm:$0xf]
      %v691 = vunpack.c.l.b16 %v654
      %v692 = vunpack.c.l.b16 %v655
      %v693 = vunpack.c.l.b16 %v656
      %v694 = vunpack.c.l.b16 %v657
      %v695 = vunpack.c.l.b16 %v658
      %v696 = vunpack.c.l.b16 %v659
      %v697 = vunpack.c.l.b16 %v660
      %v698 = vunpack.c.l.b16 %v661
      %v699 = vunpack.c.l.b16 %v662
      %v700 = vunpack.c.l.b16 %v663
      %v701 = vunpack.c.l.b16 %v664
      %v702 = vunpack.c.l.b16 %v665
      %v703 = vunpack.c.l.b16 %v666
      %v704 = vunpack.c.l.b16 %v667
      %v705 = vunpack.c.l.b16 %v668
      %v706 = vunpack.c.l.b16 %v669
      %v707 = vunpack.c.l.b16 %v670
      %v708 = vunpack.c.l.b16 %v671
      %v709 = vpack.c.b16 %v692, %v691
      %v710 = vpack.c.b16 %v694, %v693
      %v711 = vpack.c.b16 %v696, %v695
      %v712 = vpack.c.b16 %v698, %v697
      %v713 = vpack.c.b16 %v700, %v699
      %v714 = vpack.c.b16 %v702, %v701
      %v715 = vpack.c.b16 %v704, %v703
      %v716 = vpack.c.b16 %v706, %v705
      %v717 = vpack.c.b16 %v708, %v707
      %vm718 = vcmask 64512
      %v720 = vsel %vm718, %v709, 0
      %v723 = vsel %vm718, %v710, 0
      %v726 = vsel %vm718, %v711, 0
      %v729 = vsel %vm718, %v712, 0
      %v732 = vsel %vm718, %v713, 0
      %v735 = vsel %vm718, %v714, 0
      %v738 = vsel %vm718, %v715, 0
      %v741 = vsel %vm718, %v716, 0
      %v744 = vsel %vm718, %v717, 0
      %vm746 = vcmask 1043456
      %v748 = vsel %vm746, %v672, 0
      %750 = vmatpush.bf16.msra.mxu0 0
      %751 = vmatpush.bf16.msra.mxu0 0
      %752 = vmatpush.bf16.msra.mxu0 0
      %753 = vmatpush.bf16.msra.mxu0 0
      %754 = vmatpush.bf16.msra.mxu0 0
      %755 = vmatpush.bf16.msra.mxu0 0
      %756 = vmatpush.bf16.msra.mxu0 0
      %757 = vmatpush.bf16.msra.mxu0 %v748
      %758 = vmatmul.bf16.gmra.mxu0 %v720
      %v759 = vpop.f32.mrf.mxu0
      %v760 = vadd.f32 0.0, %v759
      %v761 = vpop.f32.mrf.mxu0
      %v762 = vadd.f32 0.0, %v761
      %763 = vmatmul.bf16.gmra.mxu0 %v723
      %v764 = vpop.f32.mrf.mxu0
      %v765 = vadd.f32 0.0, %v764
      %v766 = vpop.f32.mrf.mxu0
      %v767 = vadd.f32 0.0, %v766
      %768 = vmatmul.bf16.gmra.mxu0 %v726
      %v769 = vpop.f32.mrf.mxu0
      %v770 = vadd.f32 0.0, %v769
      %v771 = vpop.f32.mrf.mxu0
      %v772 = vadd.f32 0.0, %v771
      %773 = vmatmul.bf16.gmra.mxu0 %v729
      %v774 = vpop.f32.mrf.mxu0
      %v775 = vadd.f32 0.0, %v774
      %v776 = vpop.f32.mrf.mxu0
      %v777 = vadd.f32 0.0, %v776
      %778 = vmatmul.bf16.gmra.mxu0 %v732
      %v779 = vpop.f32.mrf.mxu0
      %v780 = vadd.f32 0.0, %v779
      %v781 = vpop.f32.mrf.mxu0
      %v782 = vadd.f32 0.0, %v781
      %783 = vmatmul.bf16.gmra.mxu0 %v735
      %v784 = vpop.f32.mrf.mxu0
      %v785 = vadd.f32 0.0, %v784
      %v786 = vpop.f32.mrf.mxu0
      %v787 = vadd.f32 0.0, %v786
      %788 = vmatmul.bf16.gmra.mxu0 %v738
      %v789 = vpop.f32.mrf.mxu0
      %v790 = vadd.f32 0.0, %v789
      %v791 = vpop.f32.mrf.mxu0
      %v792 = vadd.f32 0.0, %v791
      %793 = vmatmul.bf16.gmra.mxu0 %v741
      %v794 = vpop.f32.mrf.mxu0
      %v795 = vadd.f32 0.0, %v794
      %v796 = vpop.f32.mrf.mxu0
      %v797 = vadd.f32 0.0, %v796
      %798 = vmatmul.bf16.gmra.mxu0 %v744
      %v799 = vpop.f32.mrf.mxu0
      %v800 = vadd.f32 0.0, %v799
      %v801 = vpop.f32.mrf.mxu0
      %v802 = vadd.f32 0.0, %v801
      %803 = vdwg.mxu0
      %v804 = vld [vmem:[%s3] sm:$0x1]
      %v806 = vperm.slane %v804, 0
      %v808 = vadd.f32 %v760, %v806
      %v809 = vadd.f32 %v762, %v806
      %v810 = vadd.f32 %v765, %v806
      %v811 = vadd.f32 %v767, %v806
      %v812 = vadd.f32 %v770, %v806
      %v813 = vadd.f32 %v772, %v806
      %v814 = vadd.f32 %v775, %v806
      %v815 = vadd.f32 %v777, %v806
      %v816 = vadd.f32 %v780, %v806
      %v817 = vadd.f32 %v782, %v806
      %v818 = vadd.f32 %v785, %v806
      %v819 = vadd.f32 %v787, %v806
      %v820 = vadd.f32 %v790, %v806
      %v821 = vadd.f32 %v792, %v806
      %v822 = vadd.f32 %v795, %v806
      %v823 = vadd.f32 %v797, %v806
      %840 = vrot.lane.b32.xlu0 %v765, 112
      %v841 = vpop.permute.xlu0 %840
      %842 = vrot.lane.b32.xlu0 %v767, 112
      %v843 = vpop.permute.xlu0 %842
      %844 = vrot.lane.b32.xlu0 %v770, 112
      %v845 = vpop.permute.xlu0 %844
      %846 = vrot.lane.b32.xlu0 %v772, 112
      %v847 = vpop.permute.xlu0 %846
      %848 = vrot.lane.b32.xlu0 %v775, 112
      %v849 = vpop.permute.xlu0 %848
      %850 = vrot.lane.b32.xlu0 %v777, 112
      %v851 = vpop.permute.xlu0 %850
      %852 = vrot.lane.b32.xlu0 %v780, 112
      %v853 = vpop.permute.xlu0 %852
      %854 = vrot.lane.b32.xlu0 %v782, 112
      %v855 = vpop.permute.xlu0 %854
      %856 = vrot.lane.b32.xlu0 %v785, 112
      %v857 = vpop.permute.xlu0 %856
      %858 = vrot.lane.b32.xlu0 %v787, 112
      %v859 = vpop.permute.xlu0 %858
      %860 = vrot.lane.b32.xlu0 %v790, 112
      %v861 = vpop.permute.xlu0 %860
      %862 = vrot.lane.b32.xlu0 %v792, 112
      %v863 = vpop.permute.xlu0 %862
      %864 = vrot.lane.b32.xlu0 %v795, 112
      %v865 = vpop.permute.xlu0 %864
      %866 = vrot.lane.b32.xlu0 %v797, 112
      %v867 = vpop.permute.xlu0 %866
      %868 = vrot.lane.b32.xlu0 %v800, 112
      %v869 = vpop.permute.xlu0 %868
      %870 = vrot.lane.b32.xlu0 %v802, 112
      %v871 = vpop.permute.xlu0 %870
      %v888 = vadd.f32 %v760, %v841
      %v889 = vadd.f32 %v762, %v843
      %v890 = vadd.f32 %v765, %v845
      %v891 = vadd.f32 %v767, %v847
      %v892 = vadd.f32 %v770, %v849
      %v893 = vadd.f32 %v772, %v851
      %v894 = vadd.f32 %v775, %v853
      %v895 = vadd.f32 %v777, %v855
      %v896 = vadd.f32 %v780, %v857
      %v897 = vadd.f32 %v782, %v859
      %v898 = vadd.f32 %v785, %v861
      %v899 = vadd.f32 %v787, %v863
      %v900 = vadd.f32 %v790, %v865
      %v901 = vadd.f32 %v792, %v867
      %v902 = vadd.f32 %v795, %v869
      %v903 = vadd.f32 %v797, %v871
      %904 = vrot.lane.b32.xlu0 %v806, 16
      %v905 = vpop.permute.xlu0 %904
      %v907 = vadd.f32 %v888, %v905
      %v908 = vadd.f32 %v889, %v905
      %v909 = vadd.f32 %v890, %v905
      %v910 = vadd.f32 %v891, %v905
      %v911 = vadd.f32 %v892, %v905
      %v912 = vadd.f32 %v893, %v905
      %v913 = vadd.f32 %v894, %v905
      %v914 = vadd.f32 %v895, %v905
      %v915 = vadd.f32 %v896, %v905
      %v916 = vadd.f32 %v897, %v905
      %v917 = vadd.f32 %v898, %v905
      %v918 = vadd.f32 %v899, %v905
      %v919 = vadd.f32 %v900, %v905
      %v920 = vadd.f32 %v901, %v905
      %v921 = vadd.f32 %v902, %v905
      %v922 = vadd.f32 %v903, %v905
      %v923 = vpack.c.bf16 %v808, %v808
      %v924 = vpack.c.bf16 %v809, %v809
      %v925 = vpack.c.bf16 %v810, %v810
      %v926 = vpack.c.bf16 %v811, %v811
      %v927 = vpack.c.bf16 %v812, %v812
      %v928 = vpack.c.bf16 %v813, %v813
      %v929 = vpack.c.bf16 %v814, %v814
      %v930 = vpack.c.bf16 %v815, %v815
      %v931 = vpack.c.bf16 %v816, %v816
      %v932 = vpack.c.bf16 %v817, %v817
      %v933 = vpack.c.bf16 %v818, %v818
      %v934 = vpack.c.bf16 %v819, %v819
      %v935 = vpack.c.bf16 %v820, %v820
      %v936 = vpack.c.bf16 %v821, %v821
      %v937 = vpack.c.bf16 %v822, %v822
      %v938 = vpack.c.bf16 %v823, %v823
      %vm939 = vcmask 125952
      %940 = vst.msk [vmem:[%s313] sm:$0xf] %vm939, %v923
      %941 = vst.msk [vmem:[%s313 + $0x4] sm:$0xf] %vm939, %v924
      %942 = vst.msk [vmem:[%s313 + $0x10] sm:$0xf] %vm939, %v925
      %943 = vst.msk [vmem:[%s313 + $0x14] sm:$0xf] %vm939, %v926
      %944 = vst.msk [vmem:[%s313 + $0x20] sm:$0xf] %vm939, %v927
      %945 = vst.msk [vmem:[%s313 + $0x24] sm:$0xf] %vm939, %v928
      %946 = vst.msk [vmem:[%s313 + $0x30] sm:$0xf] %vm939, %v929
      %947 = vst.msk [vmem:[%s313 + $0x34] sm:$0xf] %vm939, %v930
      %948 = vst.msk [vmem:[%s313 + $0x40] sm:$0xf] %vm939, %v931
      %949 = vst.msk [vmem:[%s313 + $0x44] sm:$0xf] %vm939, %v932
      %950 = vst.msk [vmem:[%s313 + $0x50] sm:$0xf] %vm939, %v933
      %951 = vst.msk [vmem:[%s313 + $0x54] sm:$0xf] %vm939, %v934
      %952 = vst.msk [vmem:[%s313 + $0x60] sm:$0xf] %vm939, %v935
      %953 = vst.msk [vmem:[%s313 + $0x64] sm:$0xf] %vm939, %v936
      %954 = vst.msk [vmem:[%s313 + $0x70] sm:$0xf] %vm939, %v937
      %955 = vst.msk [vmem:[%s313 + $0x74] sm:$0xf] %vm939, %v938
      %v956 = vpack.c.bf16 %v907, %v907
      %v957 = vpack.c.bf16 %v908, %v908
      %v958 = vpack.c.bf16 %v909, %v909
      %v959 = vpack.c.bf16 %v910, %v910
      %v960 = vpack.c.bf16 %v911, %v911
      %v961 = vpack.c.bf16 %v912, %v912
      %v962 = vpack.c.bf16 %v913, %v913
      %v963 = vpack.c.bf16 %v914, %v914
      %v964 = vpack.c.bf16 %v915, %v915
      %v965 = vpack.c.bf16 %v916, %v916
      %v966 = vpack.c.bf16 %v917, %v917
      %v967 = vpack.c.bf16 %v918, %v918
      %v968 = vpack.c.bf16 %v919, %v919
      %v969 = vpack.c.bf16 %v920, %v920
      %v970 = vpack.c.bf16 %v921, %v921
      %v971 = vpack.c.bf16 %v922, %v922
      %988 = vrot.lane.b32.xlu0 %v956, 112
      %v989 = vpop.permute.xlu0 %988
      %990 = vrot.lane.b32.xlu0 %v957, 112
      %v991 = vpop.permute.xlu0 %990
      %992 = vrot.lane.b32.xlu0 %v958, 112
      %v993 = vpop.permute.xlu0 %992
      %994 = vrot.lane.b32.xlu0 %v959, 112
      %v995 = vpop.permute.xlu0 %994
      %996 = vrot.lane.b32.xlu0 %v960, 112
      %v997 = vpop.permute.xlu0 %996
      %998 = vrot.lane.b32.xlu0 %v961, 112
      %v999 = vpop.permute.xlu0 %998
      %1000 = vrot.lane.b32.xlu0 %v962, 112
      %v1001 = vpop.permute.xlu0 %1000
      %1002 = vrot.lane.b32.xlu0 %v963, 112
      %v1003 = vpop.permute.xlu0 %1002
      %1004 = vrot.lane.b32.xlu0 %v964, 112
      %v1005 = vpop.permute.xlu0 %1004
      %1006 = vrot.lane.b32.xlu0 %v965, 112
      %v1007 = vpop.permute.xlu0 %1006
      %1008 = vrot.lane.b32.xlu0 %v966, 112
      %v1009 = vpop.permute.xlu0 %1008
      %1010 = vrot.lane.b32.xlu0 %v967, 112
      %v1011 = vpop.permute.xlu0 %1010
      %1012 = vrot.lane.b32.xlu0 %v968, 112
      %v1013 = vpop.permute.xlu0 %1012
      %1014 = vrot.lane.b32.xlu0 %v969, 112
      %v1015 = vpop.permute.xlu0 %1014
      %1016 = vrot.lane.b32.xlu0 %v970, 112
      %v1017 = vpop.permute.xlu0 %1016
      %1018 = vrot.lane.b32.xlu0 %v971, 112
      %v1019 = vpop.permute.xlu0 %1018
      %s1036 = scalar_lea.vmem %s313, 8
      %1037 = vst.msk [vmem:[%s1036] sm:$0xf] %vm939, %v989
      %1038 = vst.msk [vmem:[%s1036 + $0x4] sm:$0xf] %vm939, %v991
      %1039 = vst.msk [vmem:[%s1036 + $0x10] sm:$0xf] %vm939, %v993
      %1040 = vst.msk [vmem:[%s1036 + $0x14] sm:$0xf] %vm939, %v995
      %1041 = vst.msk [vmem:[%s1036 + $0x20] sm:$0xf] %vm939, %v997
      %1042 = vst.msk [vmem:[%s1036 + $0x24] sm:$0xf] %vm939, %v999
      %1043 = vst.msk [vmem:[%s1036 + $0x30] sm:$0xf] %vm939, %v1001
      %1044 = vst.msk [vmem:[%s1036 + $0x34] sm:$0xf] %vm939, %v1003
      %1045 = vst.msk [vmem:[%s1036 + $0x40] sm:$0xf] %vm939, %v1005
      %1046 = vst.msk [vmem:[%s1036 + $0x44] sm:$0xf] %vm939, %v1007
      %1047 = vst.msk [vmem:[%s1036 + $0x50] sm:$0xf] %vm939, %v1009
      %1048 = vst.msk [vmem:[%s1036 + $0x54] sm:$0xf] %vm939, %v1011
      %1049 = vst.msk [vmem:[%s1036 + $0x60] sm:$0xf] %vm939, %v1013
      %1050 = vst.msk [vmem:[%s1036 + $0x64] sm:$0xf] %vm939, %v1015
      %1051 = vst.msk [vmem:[%s1036 + $0x70] sm:$0xf] %vm939, %v1017
      %1052 = vst.msk [vmem:[%s1036 + $0x74] sm:$0xf] %vm939, %v1019
      %s1053 = smul.u32 8, %s20
      %p1054 = scmp.lt.s32.totalorder %s19, 1
      %s1055 = scalar_select %p1054, %s19, 1
      %p1056 = scmp.lt.s32.totalorder %s1053, 15
      %s1057 = scalar_select %p1056, %s1053, 15
      %s1058 = smul.addr %s1057, 4
      %s1059 = smul.addr %s1055, 64
      %s1060 = sadd.s32 %s1058, %s1059
      %s1061 = smul.addr %s1060, 4
      %s1062 = scalar_lea.vmem %s4, %s1061
      // Predicated region
      $region37: #{upscale_twice.1} parent=35 // pred_check
        %p1063 = pneg %p149
      $region38: #{upscale_twice.1} parent=35 // pred_check_branch
        %1065 = sbr.rel (%p1063) target = $region40
      $region39: #{upscale_twice.1} parent=35 // pred_region
        %s1066 = smul.u32 8, %s20
      $region40: #{upscale_twice.1} parent=35 // pred_fallthru
        _
    $region36: #{upscale_twice.1} parent=5 // pred_fallthru
      _
    %p1067 = scmp.le.s32.totalorder 2, %s10
    // Predicated region
    $region41: #{upscale_twice.1} parent=5 // pred_check
      %p1068 = pneg %p1067
    $region42: #{upscale_twice.1} parent=5 // pred_check_branch
      %1070 = sbr.rel (%p1068) target = $region44
    $region43: #{upscale_twice.1} parent=5 // pred_region
      %s1071 = ssub.s32 %s10, 2
      // Predicated region
      $region45: #{upscale_twice.1} parent=43 // pred_check
        %p1072 = pneg %p155
      $region46: #{upscale_twice.1} parent=43 // pred_check_branch
        %1074 = sbr.rel (%p1072) target = $region48
      $region47: #{upscale_twice.1} parent=43 // pred_region
        %s1075 = smul.u32 8, %s22
        %p1076 = scmp.lt.s32.totalorder %s21, 1
        %s1077 = scalar_select %p1076, %s21, 1
        %p1078 = scmp.lt.s32.totalorder %s1075, 15
        %s1079 = scalar_select %p1078, %s1075, 15
        %s1080 = smul.addr %s1079, 4
        %s1081 = smul.addr %s1077, 64
        %s1082 = sadd.s32 %s1080, %s1081
        %s1083 = smul.addr %s1082, 4
        %s1084 = scalar_lea.vmem %s4, %s1083
      $region48: #{upscale_twice.1} parent=43 // pred_fallthru
        _
    $region44: #{upscale_twice.1} parent=5 // pred_fallthru
      _
  $region6: #{upscale_twice.1} parent=0 // loop_footer
    %s14 = sadd.s32 1, %s10
  $region7: #{upscale_twice.1} parent=0 // loop_footer_branch
    %9 = sbr.rel target = $region3
  $region8: #{upscale_twice.1} parent=0 // loop_exit
    _

</llo_original>
